<compile_context>
chip_gen: v7x
topology: tpu7x:2x2x1
jax: 0.10.0
libtpu: 0.0.40
codegen_flags: <defaults>
</compile_context>

<pallas_src>
import math
import jax
import jax.numpy as jnp
from jax.experimental import pallas as pl
from jax.experimental.pallas import tpu as pltpu

# ---------------- config (small, consistent with the module) ----------------
B = 2
T = 8
N_EMBD = 128                      # config.n_embd
HIDDEN = 4 * N_EMBD               # 4 * n_embd
GELU_C = math.sqrt(2.0 / math.pi)


# ---------------------------- Pallas kernel ---------------------------------
def _mlp_kernel(x_ref, wfc_ref, wproj_ref, o_ref, acc_ref):
    """One (M-tile, hidden-chunk) grid step of the fused MLP.

    x_ref    : (tm, C)   bf16   activation tile (resident across hidden axis)
    wfc_ref  : (C, tn)   bf16   chunk of c_fc.weight^T
    wproj_ref: (tn, C)   bf16   chunk of c_proj.weight^T
    o_ref    : (tm, C)   out    written on the last hidden step
    acc_ref  : (tm, C)   f32    VMEM accumulator
    """
    j = pl.program_id(1)

    @pl.when(j == 0)
    def _():
        acc_ref[...] = jnp.zeros_like(acc_ref)

    # c_fc chunk: bf16 operands on the MXU, f32 accumulation.
    h = jnp.dot(x_ref[...], wfc_ref[...],
                preferred_element_type=jnp.float32)           # (tm, tn) f32

    # new_gelu in f32 (tanh -> EUP); cubic factored: h + a*h^3 = h*(1 + a*h*h).
    g = 0.5 * h * (1.0 + jnp.tanh(GELU_C * h * (1.0 + 0.044715 * h * h)))

    # c_proj chunk: bf16 operands, accumulate in f32.
    acc_ref[...] += jnp.dot(g.astype(jnp.bfloat16), wproj_ref[...],
                            preferred_element_type=jnp.float32)

    @pl.when(j == pl.num_programs(1) - 1)
    def _():
        # dropout(p) at inference == identity.
        o_ref[...] = acc_ref[...].astype(o_ref.dtype)


# ------------------------------ wrapper --------------------------------------
def mlp_forward(x, w_fc_t_bf16, w_proj_t_bf16, *, tm=None, tn=None):
    """x: (..., C).  Weights pre-transposed to (in, out) layout and cast to bf16."""
    orig_shape = x.shape
    Cc = orig_shape[-1]
    Hh = w_fc_t_bf16.shape[1]
    out_dtype = x.dtype

    # Fold every leading dim into the matmul M dimension; cast x to bf16 once
    # (halves x DMA bytes, removes the per-tile in-kernel cast).
    x2 = x.reshape(-1, Cc).astype(jnp.bfloat16)
    M = x2.shape[0]

    if tm is None:
        if M <= 256:
            # Launch-overhead regime: one grid step over M (rounded up to the
            # 8-row sublane granule). No cross-TC split of a tiny workload.
            tm = max(8, ((M + 7) // 8) * 8)
        else:
            # Large-M regime: 256-row tiles fill v6e/v7x's 2x256x256 MXU;
            # v5e (4x128x128) just issues two pushes per tile.
            tm = 256
    if tn is None:
        # Hidden-dim chunk: single step for small hidden dims, otherwise 512
        # lanes per step so the (tm, tn) f32 intermediate stays off the spill
        # path and per-step weight VMEM stays bounded on v7x (64 MiB).
        tn = Hh if Hh <= 1024 else 512
    assert Hh % tn == 0, (Hh, tn)

    grid = (pl.cdiv(M, tm), Hh // tn)

    out = pl.pallas_call(
        _mlp_kernel,
        out_shape=jax.ShapeDtypeStruct((M, Cc), out_dtype),
        grid_spec=pltpu.PrefetchScalarGridSpec(
            num_scalar_prefetch=0,
            grid=grid,
            in_specs=[
                # x tile: constant block index along the hidden axis -> stays
                # resident in VMEM across hidden steps (no re-DMA).
                pl.BlockSpec((tm, Cc), lambda i, j: (i, 0)),
                pl.BlockSpec((Cc, tn), lambda i, j: (0, j)),   # c_fc.weight^T chunk
                pl.BlockSpec((tn, Cc), lambda i, j: (j, 0)),   # c_proj.weight^T chunk
            ],
            # Output block constant along the hidden (reduction) axis.
            out_specs=pl.BlockSpec((tm, Cc), lambda i, j: (i, 0)),
            scratch_shapes=[pltpu.VMEM((tm, Cc), jnp.float32)],
        ),
        compiler_params=pltpu.CompilerParams(
            dimension_semantics=("parallel", "arbitrary")),
    )(x2, w_fc_t_bf16, w_proj_t_bf16)

    return out.reshape(orig_shape)


# ------------------------------ pure-JAX reference ----------------------------
def reference_mlp(x, w_fc_t_f32, w_proj_t_f32):
    h = x @ w_fc_t_f32
    g = 0.5 * h * (1.0 + jnp.tanh(GELU_C * (h + 0.044715 * h ** 3)))
    return g @ w_proj_t_f32


# ----------------------------------- main --------------------------------------
if __name__ == "__main__":
    key = jax.random.PRNGKey(0)
    kx, kfc, kproj = jax.random.split(key, 3)

    # Master weights in f32 (torch nn.Linear layout is (out, in); transpose).
    std = 0.02
    w_fc = std * jax.random.normal(kfc, (HIDDEN, N_EMBD), jnp.float32)      # c_fc.weight
    w_proj = std * jax.random.normal(kproj, (N_EMBD, HIDDEN), jnp.float32)  # c_proj.weight
    w_fc_t = w_fc.T                      # (C, 4C)
    w_proj_t = w_proj.T                  # (4C, C)

    x = jax.random.normal(kx, (B, T, N_EMBD), jnp.float32)

    # Kernel consumes bf16 weights (halved DMA bytes, native MXU dtype).
    y = mlp_forward(x, w_fc_t.astype(jnp.bfloat16), w_proj_t.astype(jnp.bfloat16))
    y = jax.block_until_ready(y)
    assert y.shape == (B, T, N_EMBD), y.shape

    ref = jax.block_until_ready(reference_mlp(x, w_fc_t, w_proj_t))
    # NOTE: bf16 operand tolerance validated at C=128 / 4C=512; re-check when
    # scaling n_embd (error grows with contraction length).
    if not bool(jnp.allclose(y, ref, atol=2e-2, rtol=2e-2)):
        max_err = float(jnp.max(jnp.abs(y - ref)))
        raise AssertionError(f"Pallas output mismatch vs reference (max abs err {max_err})")

    print("KERNEL_OK")
</pallas_src>

<mosaic_0001>
module attributes {stable_mosaic.version = 11 : i64} {
  func.func @_mlp_kernel(%arg0: i32, %arg1: i32, %arg2: memref<16x128xbf16, #tpu.memory_space<vmem>>, %arg3: memref<128x512xbf16, #tpu.memory_space<vmem>>, %arg4: memref<512x128xbf16, #tpu.memory_space<vmem>>, %arg5: memref<16x128xf32, #tpu.memory_space<vmem>>, %arg6: memref<16x128xf32, #tpu.memory_space<vmem>>) attributes {dimension_semantics = [#tpu.dimension_semantics<parallel>, #tpu.dimension_semantics<arbitrary>], iteration_bounds = array<i64: 1, 1>, scalar_prefetch = 0 : i64, scratch_operands = 1 : i64, tpu.core_type = #tpu.core_type<tc>, window_params = [{transform_indices = @transform_0, window_bounds = array<i64: 16, 128>}, {transform_indices = @transform_1, window_bounds = array<i64: 128, 512>}, {transform_indices = @transform_2, window_bounds = array<i64: 512, 128>}, {transform_indices = @transform_3, window_bounds = array<i64: 16, 128>}]} {
    %c0_i32 = arith.constant 0 : i32
    %0 = arith.cmpi eq, %arg1, %c0_i32 : i32
    %1 = arith.extui %0 : i1 to i32
    %c0_i32_0 = arith.constant 0 : i32
    %2 = arith.cmpi ne, %1, %c0_i32_0 : i32
    scf.if %2 {
      %cst_18 = arith.constant 0.000000e+00 : f32
      %29 = vector.broadcast %cst_18 : f32 to vector<16x128xf32>
      %c0_19 = arith.constant 0 : index
      %c0_20 = arith.constant 0 : index
      %30 = vector.load %arg6[%c0_19, %c0_20] : memref<16x128xf32, #tpu.memory_space<vmem>>, vector<16x128xf32>
      tpu.vector_store %arg6[%c0_19, %c0_20], %29 {strides = array<i32>} : memref<16x128xf32, #tpu.memory_space<vmem>>, vector<16x128xf32>,
    } else {
    }
    %c0 = arith.constant 0 : index
    %c0_1 = arith.constant 0 : index
    %3 = vector.load %arg2[%c0, %c0_1] : memref<16x128xbf16, #tpu.memory_space<vmem>>, vector<16x128xbf16>
    %c0_2 = arith.constant 0 : index
    %c0_3 = arith.constant 0 : index
    %4 = vector.load %arg3[%c0_2, %c0_3] : memref<128x512xbf16, #tpu.memory_space<vmem>>, vector<128x512xbf16>
    %cst = arith.constant dense<0.000000e+00> : vector<16x512xf32>
    %5 = tpu.matmul %3, %4, %cst {dimension_numbers = #tpu.dot_dimension_numbers<[1], [0], [0], [1], [0, 0, 1, 1], [], []>} : vector<16x128xbf16>, vector<128x512xbf16>, vector<16x512xf32> -> vector<16x512xf32>
    %cst_4 = arith.constant 5.000000e-01 : f32
    %6 = vector.broadcast %cst_4 : f32 to vector<16x512xf32>
    %7 = arith.mulf %6, %5 : vector<16x512xf32>
    %cst_5 = arith.constant 0.797884583 : f32
    %8 = vector.broadcast %cst_5 : f32 to vector<16x512xf32>
    %9 = arith.mulf %8, %5 : vector<16x512xf32>
    %cst_6 = arith.constant 4.471500e-02 : f32
    %10 = vector.broadcast %cst_6 : f32 to vector<16x512xf32>
    %11 = arith.mulf %10, %5 : vector<16x512xf32>
    %12 = arith.mulf %11, %5 : vector<16x512xf32>
    %cst_7 = arith.constant 1.000000e+00 : f32
    %13 = vector.broadcast %cst_7 : f32 to vector<16x512xf32>
    %14 = arith.addf %13, %12 : vector<16x512xf32>
    %15 = arith.mulf %9, %14 : vector<16x512xf32>
    %16 = math.tanh %15 : vector<16x512xf32>
    %cst_8 = arith.constant 1.000000e+00 : f32
    %17 = vector.broadcast %cst_8 : f32 to vector<16x512xf32>
    %18 = arith.addf %17, %16 : vector<16x512xf32>
    %19 = arith.mulf %7, %18 : vector<16x512xf32>
    %c0_9 = arith.constant 0 : index
    %c0_10 = arith.constant 0 : index
    %20 = vector.load %arg6[%c0_9, %c0_10] : memref<16x128xf32, #tpu.memory_space<vmem>>, vector<16x128xf32>
    %21 = arith.truncf %19 : vector<16x512xf32> to vector<16x512xbf16>
    %c0_11 = arith.constant 0 : index
    %c0_12 = arith.constant 0 : index
    %22 = vector.load %arg4[%c0_11, %c0_12] : memref<512x128xbf16, #tpu.memory_space<vmem>>, vector<512x128xbf16>
    %cst_13 = arith.constant dense<0.000000e+00> : vector<16x128xf32>
    %23 = tpu.matmul %21, %22, %cst_13 {dimension_numbers = #tpu.dot_dimension_numbers<[1], [0], [0], [1], [0, 0, 1, 1], [], []>} : vector<16x512xbf16>, vector<512x128xbf16>, vector<16x128xf32> -> vector<16x128xf32>
    %24 = arith.addf %20, %23 : vector<16x128xf32>
    %c0_14 = arith.constant 0 : index
    %c0_15 = arith.constant 0 : index
    %25 = vector.load %arg6[%c0_14, %c0_15] : memref<16x128xf32, #tpu.memory_space<vmem>>, vector<16x128xf32>
    tpu.vector_store %arg6[%c0_14, %c0_15], %24 {strides = array<i32>} : memref<16x128xf32, #tpu.memory_space<vmem>>, vector<16x128xf32>,
    %c0_i32_16 = arith.constant 0 : i32
    %26 = arith.cmpi eq, %arg1, %c0_i32_16 : i32
    %27 = arith.extui %26 : i1 to i32
    %c0_i32_17 = arith.constant 0 : i32
    %28 = arith.cmpi ne, %27, %c0_i32_17 : i32
    scf.if %28 {
      %c0_18 = arith.constant 0 : index
      %c0_19 = arith.constant 0 : index
      %29 = vector.load %arg6[%c0_18, %c0_19] : memref<16x128xf32, #tpu.memory_space<vmem>>, vector<16x128xf32>
      %c0_20 = arith.constant 0 : index
      %c0_21 = arith.constant 0 : index
      %30 = vector.load %arg5[%c0_20, %c0_21] : memref<16x128xf32, #tpu.memory_space<vmem>>, vector<16x128xf32>
      tpu.vector_store %arg5[%c0_20, %c0_21], %29 {strides = array<i32>} : memref<16x128xf32, #tpu.memory_space<vmem>>, vector<16x128xf32>,
    } else {
    }
    return
  }
  func.func @transform_0(%arg0: i32, %arg1: i32) -> (i32, i32) {
    %c0_i32 = arith.constant 0 : i32
    %c0_i32_0 = arith.constant 0 : i32
    return %arg0, %c0_i32 : i32, i32
  }
  func.func @transform_1(%arg0: i32, %arg1: i32) -> (i32, i32) {
    %c0_i32 = arith.constant 0 : i32
    %c0_i32_0 = arith.constant 0 : i32
    return %c0_i32, %arg1 : i32, i32
  }
  func.func @transform_2(%arg0: i32, %arg1: i32) -> (i32, i32) {
    %c0_i32 = arith.constant 0 : i32
    %c0_i32_0 = arith.constant 0 : i32
    return %arg1, %c0_i32 : i32, i32
  }
  func.func @transform_3(%arg0: i32, %arg1: i32) -> (i32, i32) {
    %c0_i32 = arith.constant 0 : i32
    %c0_i32_0 = arith.constant 0 : i32
    return %arg0, %c0_i32 : i32, i32
  }
}

</mosaic_0001>

<llo_original>
// kernel: tpu_custom_call.1
$region0: #{tpu_custom_call.1}
  #allocation0 [shape = 'u32[]', space=smem, size = 0x4, offset = 0x4, fixed_abs, tag = 'smem constant byte address 0x4 - core index']
  #allocation1 [shape = 'u32[144,128]{1,0:T(1,128)}', space=vmem, size = 0x12000, scoped, tag = 'internal scratch']
  #allocation2 [shape = 'f32[16,128]{1,0:T(8,128)}', space=vmem, size = 0x2000, scoped, tag = 'scratch operand']
  %s0 = inlined_call_operand.hbm [shape: bf16[16,128], index: 0, kind: input, shape index: {}]
  %s1 = inlined_call_operand.hbm [shape: bf16[128,512], index: 1, kind: input, shape index: {}]
  %s2 = inlined_call_operand.hbm [shape: bf16[512,128], index: 2, kind: input, shape index: {}]
  %s3 = inlined_call_operand.hbm [shape: f32[16,128], index: 3, kind: output, shape index: {}]
  %s4 = sld [smem:[#allocation0]]
  $region42: #{tpu_custom_call.1} parent=0
    _
  %s6 = ssub.s32 1, %s4
  %s7 = scalar_select 0, %s6, %s4
  $region1: #{tpu_custom_call.1} parent=0
    #allocation3 [shape = 'u8[4096]{0}', space=vmem, size = 0x1000, scoped, tag = 'input window, operand 0, single buffered']
    #allocation4 [shape = 's32[1]{0}', space=sflag, size = 0x4, scoped, tag = 'scoped memory for tpu_custom_call.1']
    #allocation5 [shape = 's32[1]{0}', space=sflag, size = 0x4, scoped, tag = 'scoped memory for tpu_custom_call.1']
    #allocation6 [shape = 'u8[131072]{0}', space=vmem, size = 0x20000, scoped, tag = 'input window, operand 1, single buffered']
    #allocation7 [shape = 's32[1]{0}', space=sflag, size = 0x4, scoped, tag = 'scoped memory for tpu_custom_call.1']
    #allocation8 [shape = 'u8[131072]{0}', space=vmem, size = 0x20000, scoped, tag = 'input window, operand 2, single buffered']
    #allocation9 [shape = 'u8[8192]{0}', space=vmem, size = 0x2000, scoped, tag = 'output window, operand 0, single buffered']
    %8 = vsyncpa [#allocation4], 0
    %9 = vsyncpa [#allocation7], 0
    %10 = vsyncpa [#allocation5], 0
    // Predicated region
    $region2: #{tpu_custom_call.1} parent=1 // pred_check
      _
    $region3: #{tpu_custom_call.1} parent=1 // pred_check_branch
      %12 = sbr.rel (0) target = $region5
    $region4: #{tpu_custom_call.1} parent=1 // pred_region
      %s14 = ssub.s32 128, 128
      %15 = vsyncadd [#allocation4], %s14
      %s16 = sshll.u32 [#allocation3], 4
      %s17 = int_to_ptr.vmem [resolvable:$true] %s16
      %22 = dma.hbm_to_vmem [thread:$0]  %s0, 128, %s17, [#allocation4], 64, 64, 4
    $region5: #{tpu_custom_call.1} parent=1 // pred_fallthru
      _
    // Predicated region
    $region6: #{tpu_custom_call.1} parent=1 // pred_check
      _
    $region7: #{tpu_custom_call.1} parent=1 // pred_check_branch
      %24 = sbr.rel (0) target = $region9
    $region8: #{tpu_custom_call.1} parent=1 // pred_region
      %s26 = ssub.s32 4096, 4096
      %27 = vsyncadd [#allocation7], %s26
      %s28 = sshll.u32 [#allocation6], 4
      %s29 = int_to_ptr.vmem [resolvable:$true] %s28
      %34 = dma.hbm_to_vmem [thread:$0]  %s1, 4096, %s29, [#allocation7], 256, 256, 16
    $region9: #{tpu_custom_call.1} parent=1 // pred_fallthru
      _
    // Predicated region
    $region10: #{tpu_custom_call.1} parent=1 // pred_check
      _
    $region11: #{tpu_custom_call.1} parent=1 // pred_check_branch
      %36 = sbr.rel (0) target = $region13
    $region12: #{tpu_custom_call.1} parent=1 // pred_region
      %s38 = ssub.s32 4096, 4096
      %39 = vsyncadd [#allocation7], %s38
      %s40 = sshll.u32 [#allocation8], 4
      %s41 = int_to_ptr.vmem [resolvable:$true] %s40
      %46 = dma.hbm_to_vmem [thread:$0]  %s2, 4096, %s41, [#allocation7], 64, 64, 4
    $region13: #{tpu_custom_call.1} parent=1 // pred_fallthru
      _
    // Predicated region
    $region14: #{tpu_custom_call.1} parent=1 // pred_check
      _
    $region15: #{tpu_custom_call.1} parent=1 // pred_check_branch
      %48 = sbr.rel (0) target = $region17
    $region16: #{tpu_custom_call.1} parent=1 // pred_region
      %49 = dma.done [#allocation4], 128
    $region17: #{tpu_custom_call.1} parent=1 // pred_fallthru
      _
    // Predicated region
    $region18: #{tpu_custom_call.1} parent=1 // pred_check
      _
    $region19: #{tpu_custom_call.1} parent=1 // pred_check_branch
      %51 = sbr.rel (0) target = $region21
    $region20: #{tpu_custom_call.1} parent=1 // pred_region
      %52 = dma.done [#allocation7], 4096
    $region21: #{tpu_custom_call.1} parent=1 // pred_fallthru
      _
    // Predicated region
    $region22: #{tpu_custom_call.1} parent=1 // pred_check
      _
    $region23: #{tpu_custom_call.1} parent=1 // pred_check_branch
      %54 = sbr.rel (0) target = $region25
    $region24: #{tpu_custom_call.1} parent=1 // pred_region
      %55 = dma.done [#allocation7], 4096
    $region25: #{tpu_custom_call.1} parent=1 // pred_fallthru
      _
    %p57 = scmp.eq.s32.totalorder 0, 0
    // Predicated region
    $region26: #{tpu_custom_call.1} parent=1 // pred_check
      %p58 = pneg %p57
    $region27: #{tpu_custom_call.1} parent=1 // pred_check_branch
      %60 = sbr.rel (%p58) target = $region29
    $region28: #{tpu_custom_call.1} parent=1 // pred_region
      %61 = vst [vmem:[#allocation2] sm:$0xff] 0.0
      %62 = vst [vmem:[#allocation2 + $0x8] sm:$0xff] 0.0
    $region29: #{tpu_custom_call.1} parent=1 // pred_fallthru
      _
    %v63 = vld [vmem:[#allocation3] sm:$0xf]
    %v64 = vld [vmem:[#allocation3 + $0x4] sm:$0xf]
    %v65 = vld [vmem:[#allocation6] sm:$0xff]
    %v66 = vld [vmem:[#allocation6 + $0x8] sm:$0xff]
    %v67 = vld [vmem:[#allocation6 + $0x10] sm:$0xff]
    %v68 = vld [vmem:[#allocation6 + $0x18] sm:$0xff]
    %v69 = vld [vmem:[#allocation6 + $0x20] sm:$0xff]
    %v70 = vld [vmem:[#allocation6 + $0x28] sm:$0xff]
    %v71 = vld [vmem:[#allocation6 + $0x30] sm:$0xff]
    %v72 = vld [vmem:[#allocation6 + $0x38] sm:$0xff]
    %v73 = vld [vmem:[#allocation6 + $0x40] sm:$0xff]
    %v74 = vld [vmem:[#allocation6 + $0x48] sm:$0xff]
    %v75 = vld [vmem:[#allocation6 + $0x50] sm:$0xff]
    %v76 = vld [vmem:[#allocation6 + $0x58] sm:$0xff]
    %v77 = vld [vmem:[#allocation6 + $0x60] sm:$0xff]
    %v78 = vld [vmem:[#allocation6 + $0x68] sm:$0xff]
    %v79 = vld [vmem:[#allocation6 + $0x70] sm:$0xff]
    %v80 = vld [vmem:[#allocation6 + $0x78] sm:$0xff]
    %v81 = vld [vmem:[#allocation6 + $0x80] sm:$0xff]
    %v82 = vld [vmem:[#allocation6 + $0x88] sm:$0xff]
    %v83 = vld [vmem:[#allocation6 + $0x90] sm:$0xff]
    %v84 = vld [vmem:[#allocation6 + $0x98] sm:$0xff]
    %v85 = vld [vmem:[#allocation6 + $0xa0] sm:$0xff]
    %v86 = vld [vmem:[#allocation6 + $0xa8] sm:$0xff]
    %v87 = vld [vmem:[#allocation6 + $0xb0] sm:$0xff]
    %v88 = vld [vmem:[#allocation6 + $0xb8] sm:$0xff]
    %v89 = vld [vmem:[#allocation6 + $0xc0] sm:$0xff]
    %v90 = vld [vmem:[#allocation6 + $0xc8] sm:$0xff]
    %v91 = vld [vmem:[#allocation6 + $0xd0] sm:$0xff]
    %v92 = vld [vmem:[#allocation6 + $0xd8] sm:$0xff]
    %v93 = vld [vmem:[#allocation6 + $0xe0] sm:$0xff]
    %v94 = vld [vmem:[#allocation6 + $0xe8] sm:$0xff]
    %v95 = vld [vmem:[#allocation6 + $0xf0] sm:$0xff]
    %v96 = vld [vmem:[#allocation6 + $0xf8] sm:$0xff]
    %v99 = vunpack.c.l.b16 %v63
    %v100 = vunpack.c.l.b16 %v64
    %v101 = vpack.c.b16 %v100, %v99
    %v135 = vunpack.c.l.b16 %v65
    %v136 = vunpack.c.h.b16 %v65
    %v137 = vunpack.c.l.b16 %v66
    %v138 = vunpack.c.h.b16 %v66
    %v139 = vunpack.c.l.b16 %v67
    %v140 = vunpack.c.h.b16 %v67
    %v141 = vunpack.c.l.b16 %v68
    %v142 = vunpack.c.h.b16 %v68
    %v143 = vunpack.c.l.b16 %v69
    %v144 = vunpack.c.h.b16 %v69
    %v145 = vunpack.c.l.b16 %v70
    %v146 = vunpack.c.h.b16 %v70
    %v147 = vunpack.c.l.b16 %v71
    %v148 = vunpack.c.h.b16 %v71
    %v149 = vunpack.c.l.b16 %v72
    %v150 = vunpack.c.h.b16 %v72
    %v151 = vunpack.c.l.b16 %v73
    %v152 = vunpack.c.h.b16 %v73
    %v153 = vunpack.c.l.b16 %v74
    %v154 = vunpack.c.h.b16 %v74
    %v155 = vunpack.c.l.b16 %v75
    %v156 = vunpack.c.h.b16 %v75
    %v157 = vunpack.c.l.b16 %v76
    %v158 = vunpack.c.h.b16 %v76
    %v159 = vunpack.c.l.b16 %v77
    %v160 = vunpack.c.h.b16 %v77
    %v161 = vunpack.c.l.b16 %v78
    %v162 = vunpack.c.h.b16 %v78
    %v163 = vunpack.c.l.b16 %v79
    %v164 = vunpack.c.h.b16 %v79
    %v165 = vunpack.c.l.b16 %v80
    %v166 = vunpack.c.h.b16 %v80
    %v167 = vunpack.c.l.b16 %v81
    %v168 = vunpack.c.h.b16 %v81
    %v169 = vunpack.c.l.b16 %v82
    %v170 = vunpack.c.h.b16 %v82
    %v171 = vunpack.c.l.b16 %v83
    %v172 = vunpack.c.h.b16 %v83
    %v173 = vunpack.c.l.b16 %v84
    %v174 = vunpack.c.h.b16 %v84
    %v175 = vunpack.c.l.b16 %v85
    %v176 = vunpack.c.h.b16 %v85
    %v177 = vunpack.c.l.b16 %v86
    %v178 = vunpack.c.h.b16 %v86
    %v179 = vunpack.c.l.b16 %v87
    %v180 = vunpack.c.h.b16 %v87
    %v181 = vunpack.c.l.b16 %v88
    %v182 = vunpack.c.h.b16 %v88
    %v183 = vunpack.c.l.b16 %v89
    %v184 = vunpack.c.h.b16 %v89
    %v185 = vunpack.c.l.b16 %v90
    %v186 = vunpack.c.h.b16 %v90
    %v187 = vunpack.c.l.b16 %v91
    %v188 = vunpack.c.h.b16 %v91
    %v189 = vunpack.c.l.b16 %v92
    %v190 = vunpack.c.h.b16 %v92
    %v191 = vunpack.c.l.b16 %v93
    %v192 = vunpack.c.h.b16 %v93
    %v193 = vunpack.c.l.b16 %v94
    %v194 = vunpack.c.h.b16 %v94
    %v195 = vunpack.c.l.b16 %v95
    %v196 = vunpack.c.h.b16 %v95
    %v197 = vunpack.c.l.b16 %v96
    %v198 = vunpack.c.h.b16 %v96
    %v199 = vpack.c.b16 %v139, %v135
    %v200 = vpack.c.b16 %v140, %v136
    %v201 = vpack.c.b16 %v141, %v137
    %v202 = vpack.c.b16 %v142, %v138
    %v203 = vpack.c.b16 %v147, %v143
    %v204 = vpack.c.b16 %v148, %v144
    %v205 = vpack.c.b16 %v149, %v145
    %v206 = vpack.c.b16 %v150, %v146
    %v207 = vpack.c.b16 %v155, %v151
    %v208 = vpack.c.b16 %v156, %v152
    %v209 = vpack.c.b16 %v157, %v153
    %v210 = vpack.c.b16 %v158, %v154
    %v211 = vpack.c.b16 %v163, %v159
    %v212 = vpack.c.b16 %v164, %v160
    %v213 = vpack.c.b16 %v165, %v161
    %v214 = vpack.c.b16 %v166, %v162
    %v215 = vpack.c.b16 %v171, %v167
    %v216 = vpack.c.b16 %v172, %v168
    %v217 = vpack.c.b16 %v173, %v169
    %v218 = vpack.c.b16 %v174, %v170
    %v219 = vpack.c.b16 %v179, %v175
    %v220 = vpack.c.b16 %v180, %v176
    %v221 = vpack.c.b16 %v181, %v177
    %v222 = vpack.c.b16 %v182, %v178
    %v223 = vpack.c.b16 %v187, %v183
    %v224 = vpack.c.b16 %v188, %v184
    %v225 = vpack.c.b16 %v189, %v185
    %v226 = vpack.c.b16 %v190, %v186
    %v227 = vpack.c.b16 %v195, %v191
    %v228 = vpack.c.b16 %v196, %v192
    %v229 = vpack.c.b16 %v197, %v193
    %v230 = vpack.c.b16 %v198, %v194
    %263 = vmatprep.subr.bf16.mxu0 %v200
    %264 = vmatpush1.bf16.msra.mxu0 %v199
    %265 = vmatprep.subr.bf16.mxu0 %v204
    %266 = vmatpush1.bf16.msra.mxu0 %v203
    %267 = vmatprep.subr.bf16.mxu0 %v208
    %268 = vmatpush1.bf16.msra.mxu0 %v207
    %269 = vmatprep.subr.bf16.mxu0 %v212
    %270 = vmatpush1.bf16.msra.mxu0 %v211
    %271 = vmatprep.subr.bf16.mxu0 %v216
    %272 = vmatpush1.bf16.msra.mxu0 %v215
    %273 = vmatprep.subr.bf16.mxu0 %v220
    %274 = vmatpush1.bf16.msra.mxu0 %v219
    %275 = vmatprep.subr.bf16.mxu0 %v224
    %276 = vmatpush1.bf16.msra.mxu0 %v223
    %277 = vmatprep.subr.bf16.mxu0 %v228
    %278 = vmatpush1.bf16.msra.mxu0 %v227
    %279 = vmatprep.subr.bf16.mxu0 0
    %280 = vmatpush1.bf16.msra.mxu0 0
    %281 = vmatprep.subr.bf16.mxu0 0
    %282 = vmatpush1.bf16.msra.mxu0 0
    %283 = vmatprep.subr.bf16.mxu0 0
    %284 = vmatpush1.bf16.msra.mxu0 0
    %285 = vmatprep.subr.bf16.mxu0 0
    %286 = vmatpush1.bf16.msra.mxu0 0
    %287 = vmatprep.subr.bf16.mxu0 0
    %288 = vmatpush1.bf16.msra.mxu0 0
    %289 = vmatprep.subr.bf16.mxu0 0
    %290 = vmatpush1.bf16.msra.mxu0 0
    %291 = vmatprep.subr.bf16.mxu0 0
    %292 = vmatpush1.bf16.msra.mxu0 0
    %293 = vmatprep.subr.bf16.mxu0 0
    %294 = vmatpush1.bf16.msra.mxu0 0
    %295 = vmatprep.mubr.bf16.mxu0 0
    %296 = vmatmul.mubr.bf16.gmra.mrb[0].mxu0 %v101
    %v297 = vpop.f32.mrb[0].mxu0
    %v298 = vadd.f32 0.0, %v297
    %v299 = vpop.f32.mrb[0].mxu0
    %v300 = vadd.f32 0.0, %v299
    %v301 = vpop.f32.mrb[0].mxu0
    %v302 = vadd.f32 0.0, %v301
    %v303 = vpop.f32.mrb[0].mxu0
    %v304 = vadd.f32 0.0, %v303
    %305 = vdwg.mxu0
    %306 = vmatprep.subr.bf16.mxu0 %v202
    %307 = vmatpush1.bf16.msra.mxu0 %v201
    %308 = vmatprep.subr.bf16.mxu0 %v206
    %309 = vmatpush1.bf16.msra.mxu0 %v205
    %310 = vmatprep.subr.bf16.mxu0 %v210
    %311 = vmatpush1.bf16.msra.mxu0 %v209
    %312 = vmatprep.subr.bf16.mxu0 %v214
    %313 = vmatpush1.bf16.msra.mxu0 %v213
    %314 = vmatprep.subr.bf16.mxu0 %v218
    %315 = vmatpush1.bf16.msra.mxu0 %v217
    %316 = vmatprep.subr.bf16.mxu0 %v222
    %317 = vmatpush1.bf16.msra.mxu0 %v221
    %318 = vmatprep.subr.bf16.mxu0 %v226
    %319 = vmatpush1.bf16.msra.mxu0 %v225
    %320 = vmatprep.subr.bf16.mxu0 %v230
    %321 = vmatpush1.bf16.msra.mxu0 %v229
    %322 = vmatprep.subr.bf16.mxu0 0
    %323 = vmatpush1.bf16.msra.mxu0 0
    %324 = vmatprep.subr.bf16.mxu0 0
    %325 = vmatpush1.bf16.msra.mxu0 0
    %326 = vmatprep.subr.bf16.mxu0 0
    %327 = vmatpush1.bf16.msra.mxu0 0
    %328 = vmatprep.subr.bf16.mxu0 0
    %329 = vmatpush1.bf16.msra.mxu0 0
    %330 = vmatprep.subr.bf16.mxu0 0
    %331 = vmatpush1.bf16.msra.mxu0 0
    %332 = vmatprep.subr.bf16.mxu0 0
    %333 = vmatpush1.bf16.msra.mxu0 0
    %334 = vmatprep.subr.bf16.mxu0 0
    %335 = vmatpush1.bf16.msra.mxu0 0
    %336 = vmatprep.subr.bf16.mxu0 0
    %337 = vmatpush1.bf16.msra.mxu0 0
    %338 = vmatprep.mubr.bf16.mxu0 0
    %339 = vmatmul.mubr.bf16.gmra.mrb[0].mxu0 %v101
    %v340 = vpop.f32.mrb[0].mxu0
    %v341 = vadd.f32 0.0, %v340
    %v342 = vpop.f32.mrb[0].mxu0
    %v343 = vadd.f32 0.0, %v342
    %v344 = vpop.f32.mrb[0].mxu0
    %v345 = vadd.f32 0.0, %v344
    %v346 = vpop.f32.mrb[0].mxu0
    %v347 = vadd.f32 0.0, %v346
    %348 = vdwg.mxu0
    %v349 = vmul.f32 %v298, 0.5
    %v350 = vmul.f32 %v300, 0.5
    %v351 = vmul.f32 %v341, 0.5
    %v352 = vmul.f32 %v343, 0.5
    %v353 = vmul.f32 %v302, 0.5
    %v354 = vmul.f32 %v304, 0.5
    %v355 = vmul.f32 %v345, 0.5
    %v356 = vmul.f32 %v347, 0.5
    %v357 = vmul.f32 %v298, 0.7978846
    %v358 = vmul.f32 %v300, 0.7978846
    %v359 = vmul.f32 %v341, 0.7978846
    %v360 = vmul.f32 %v343, 0.7978846
    %v361 = vmul.f32 %v302, 0.7978846
    %v362 = vmul.f32 %v304, 0.7978846
    %v363 = vmul.f32 %v345, 0.7978846
    %v364 = vmul.f32 %v347, 0.7978846
    %v365 = vmul.f32 %v298, 0.044715
    %v366 = vmul.f32 %v300, 0.044715
    %v367 = vmul.f32 %v341, 0.044715
    %v368 = vmul.f32 %v343, 0.044715
    %v369 = vmul.f32 %v302, 0.044715
    %v370 = vmul.f32 %v304, 0.044715
    %v371 = vmul.f32 %v345, 0.044715
    %v372 = vmul.f32 %v347, 0.044715
    %v373 = vmul.f32 %v365, %v298
    %v374 = vmul.f32 %v366, %v300
    %v375 = vmul.f32 %v367, %v341
    %v376 = vmul.f32 %v368, %v343
    %v377 = vmul.f32 %v369, %v302
    %v378 = vmul.f32 %v370, %v304
    %v379 = vmul.f32 %v371, %v345
    %v380 = vmul.f32 %v372, %v347
    %v381 = vadd.f32 %v373, 1.0
    %v382 = vadd.f32 %v374, 1.0
    %v383 = vadd.f32 %v375, 1.0
    %v384 = vadd.f32 %v376, 1.0
    %v385 = vadd.f32 %v377, 1.0
    %v386 = vadd.f32 %v378, 1.0
    %v387 = vadd.f32 %v379, 1.0
    %v388 = vadd.f32 %v380, 1.0
    %v389 = vmul.f32 %v357, %v381
    %v390 = vmul.f32 %v358, %v382
    %v391 = vmul.f32 %v359, %v383
    %v392 = vmul.f32 %v360, %v384
    %v393 = vmul.f32 %v361, %v385
    %v394 = vmul.f32 %v362, %v386
    %v395 = vmul.f32 %v363, %v387
    %v396 = vmul.f32 %v364, %v388
    %v397 = vtanh.pop %v389
    %v398 = vtanh.pop %v390
    %v399 = vtanh.pop %v391
    %v400 = vtanh.pop %v392
    %v401 = vtanh.pop %v393
    %v402 = vtanh.pop %v394
    %v403 = vtanh.pop %v395
    %v404 = vtanh.pop %v396
    %v405 = vadd.f32 %v397, 1.0
    %v406 = vadd.f32 %v398, 1.0
    %v407 = vadd.f32 %v399, 1.0
    %v408 = vadd.f32 %v400, 1.0
    %v409 = vadd.f32 %v401, 1.0
    %v410 = vadd.f32 %v402, 1.0
    %v411 = vadd.f32 %v403, 1.0
    %v412 = vadd.f32 %v404, 1.0
    %v413 = vmul.f32 %v349, %v405
    %v414 = vmul.f32 %v350, %v406
    %v415 = vmul.f32 %v351, %v407
    %v416 = vmul.f32 %v352, %v408
    %v417 = vmul.f32 %v353, %v409
    %v418 = vmul.f32 %v354, %v410
    %v419 = vmul.f32 %v355, %v411
    %v420 = vmul.f32 %v356, %v412
    %v421 = vld [vmem:[#allocation2] sm:$0xff]
    %v422 = vld [vmem:[#allocation2 + $0x8] sm:$0xff]
    %v423 = vpack.c.bf16 %v417, %v413
    %v424 = vpack.c.bf16 %v418, %v414
    %v425 = vpack.c.bf16 %v419, %v415
    %v426 = vpack.c.bf16 %v420, %v416
    %v427 = vld [vmem:[#allocation8] sm:$0xf]
    %v428 = vld [vmem:[#allocation8 + $0x4] sm:$0xf]
    %v429 = vld [vmem:[#allocation8 + $0x8] sm:$0xf]
    %v430 = vld [vmem:[#allocation8 + $0xc] sm:$0xf]
    %v431 = vld [vmem:[#allocation8 + $0x10] sm:$0xf]
    %v432 = vld [vmem:[#allocation8 + $0x14] sm:$0xf]
    %v433 = vld [vmem:[#allocation8 + $0x18] sm:$0xf]
    %v434 = vld [vmem:[#allocation8 + $0x1c] sm:$0xf]
    %v435 = vld [vmem:[#allocation8 + $0x20] sm:$0xf]
    %v436 = vld [vmem:[#allocation8 + $0x24] sm:$0xf]
    %v437 = vld [vmem:[#allocation8 + $0x28] sm:$0xf]
    %v438 = vld [vmem:[#allocation8 + $0x2c] sm:$0xf]
    %v439 = vld [vmem:[#allocation8 + $0x30] sm:$0xf]
    %v440 = vld [vmem:[#allocation8 + $0x34] sm:$0xf]
    %v441 = vld [vmem:[#allocation8 + $0x38] sm:$0xf]
    %v442 = vld [vmem:[#allocation8 + $0x3c] sm:$0xf]
    %v443 = vld [vmem:[#allocation8 + $0x40] sm:$0xf]
    %v444 = vld [vmem:[#allocation8 + $0x44] sm:$0xf]
    %v445 = vld [vmem:[#allocation8 + $0x48] sm:$0xf]
    %v446 = vld [vmem:[#allocation8 + $0x4c] sm:$0xf]
    %v447 = vld [vmem:[#allocation8 + $0x50] sm:$0xf]
    %v448 = vld [vmem:[#allocation8 + $0x54] sm:$0xf]
    %v449 = vld [vmem:[#allocation8 + $0x58] sm:$0xf]
    %v450 = vld [vmem:[#allocation8 + $0x5c] sm:$0xf]
    %v451 = vld [vmem:[#allocation8 + $0x60] sm:$0xf]
    %v452 = vld [vmem:[#allocation8 + $0x64] sm:$0xf]
    %v453 = vld [vmem:[#allocation8 + $0x68] sm:$0xf]
    %v454 = vld [vmem:[#allocation8 + $0x6c] sm:$0xf]
    %v455 = vld [vmem:[#allocation8 + $0x70] sm:$0xf]
    %v456 = vld [vmem:[#allocation8 + $0x74] sm:$0xf]
    %v457 = vld [vmem:[#allocation8 + $0x78] sm:$0xf]
    %v458 = vld [vmem:[#allocation8 + $0x7c] sm:$0xf]
    %v459 = vld [vmem:[#allocation8 + $0x80] sm:$0xf]
    %v460 = vld [vmem:[#allocation8 + $0x84] sm:$0xf]
    %v461 = vld [vmem:[#allocation8 + $0x88] sm:$0xf]
    %v462 = vld [vmem:[#allocation8 + $0x8c] sm:$0xf]
    %v463 = vld [vmem:[#allocation8 + $0x90] sm:$0xf]
    %v464 = vld [vmem:[#allocation8 + $0x94] sm:$0xf]
    %v465 = vld [vmem:[#allocation8 + $0x98] sm:$0xf]
    %v466 = vld [vmem:[#allocation8 + $0x9c] sm:$0xf]
    %v467 = vld [vmem:[#allocation8 + $0xa0] sm:$0xf]
    %v468 = vld [vmem:[#allocation8 + $0xa4] sm:$0xf]
    %v469 = vld [vmem:[#allocation8 + $0xa8] sm:$0xf]
    %v470 = vld [vmem:[#allocation8 + $0xac] sm:$0xf]
    %v471 = vld [vmem:[#allocation8 + $0xb0] sm:$0xf]
    %v472 = vld [vmem:[#allocation8 + $0xb4] sm:$0xf]
    %v473 = vld [vmem:[#allocation8 + $0xb8] sm:$0xf]
    %v474 = vld [vmem:[#allocation8 + $0xbc] sm:$0xf]
    %v475 = vld [vmem:[#allocation8 + $0xc0] sm:$0xf]
    %v476 = vld [vmem:[#allocation8 + $0xc4] sm:$0xf]
    %v477 = vld [vmem:[#allocation8 + $0xc8] sm:$0xf]
    %v478 = vld [vmem:[#allocation8 + $0xcc] sm:$0xf]
    %v479 = vld [vmem:[#allocation8 + $0xd0] sm:$0xf]
    %v480 = vld [vmem:[#allocation8 + $0xd4] sm:$0xf]
    %v481 = vld [vmem:[#allocation8 + $0xd8] sm:$0xf]
    %v482 = vld [vmem:[#allocation8 + $0xdc] sm:$0xf]
    %v483 = vld [vmem:[#allocation8 + $0xe0] sm:$0xf]
    %v484 = vld [vmem:[#allocation8 + $0xe4] sm:$0xf]
    %v485 = vld [vmem:[#allocation8 + $0xe8] sm:$0xf]
    %v486 = vld [vmem:[#allocation8 + $0xec] sm:$0xf]
    %v487 = vld [vmem:[#allocation8 + $0xf0] sm:$0xf]
    %v488 = vld [vmem:[#allocation8 + $0xf4] sm:$0xf]
    %v489 = vld [vmem:[#allocation8 + $0xf8] sm:$0xf]
    %v490 = vld [vmem:[#allocation8 + $0xfc] sm:$0xf]
    %v555 = vunpack.c.l.b16 %v427
    %v556 = vunpack.c.l.b16 %v428
    %v557 = vunpack.c.l.b16 %v429
    %v558 = vunpack.c.l.b16 %v430
    %v559 = vunpack.c.l.b16 %v431
    %v560 = vunpack.c.l.b16 %v432
    %v561 = vunpack.c.l.b16 %v433
    %v562 = vunpack.c.l.b16 %v434
    %v563 = vunpack.c.l.b16 %v435
    %v564 = vunpack.c.l.b16 %v436
    %v565 = vunpack.c.l.b16 %v437
    %v566 = vunpack.c.l.b16 %v438
    %v567 = vunpack.c.l.b16 %v439
    %v568 = vunpack.c.l.b16 %v440
    %v569 = vunpack.c.l.b16 %v441
    %v570 = vunpack.c.l.b16 %v442
    %v571 = vunpack.c.l.b16 %v443
    %v572 = vunpack.c.l.b16 %v444
    %v573 = vunpack.c.l.b16 %v445
    %v574 = vunpack.c.l.b16 %v446
    %v575 = vunpack.c.l.b16 %v447
    %v576 = vunpack.c.l.b16 %v448
    %v577 = vunpack.c.l.b16 %v449
    %v578 = vunpack.c.l.b16 %v450
    %v579 = vunpack.c.l.b16 %v451
    %v580 = vunpack.c.l.b16 %v452
    %v581 = vunpack.c.l.b16 %v453
    %v582 = vunpack.c.l.b16 %v454
    %v583 = vunpack.c.l.b16 %v455
    %v584 = vunpack.c.l.b16 %v456
    %v585 = vunpack.c.l.b16 %v457
    %v586 = vunpack.c.l.b16 %v458
    %v587 = vunpack.c.l.b16 %v459
    %v588 = vunpack.c.l.b16 %v460
    %v589 = vunpack.c.l.b16 %v461
    %v590 = vunpack.c.l.b16 %v462
    %v591 = vunpack.c.l.b16 %v463
    %v592 = vunpack.c.l.b16 %v464
    %v593 = vunpack.c.l.b16 %v465
    %v594 = vunpack.c.l.b16 %v466
    %v595 = vunpack.c.l.b16 %v467
    %v596 = vunpack.c.l.b16 %v468
    %v597 = vunpack.c.l.b16 %v469
    %v598 = vunpack.c.l.b16 %v470
    %v599 = vunpack.c.l.b16 %v471
    %v600 = vunpack.c.l.b16 %v472
    %v601 = vunpack.c.l.b16 %v473
    %v602 = vunpack.c.l.b16 %v474
    %v603 = vunpack.c.l.b16 %v475
    %v604 = vunpack.c.l.b16 %v476
    %v605 = vunpack.c.l.b16 %v477
    %v606 = vunpack.c.l.b16 %v478
    %v607 = vunpack.c.l.b16 %v479
    %v608 = vunpack.c.l.b16 %v480
    %v609 = vunpack.c.l.b16 %v481
    %v610 = vunpack.c.l.b16 %v482
    %v611 = vunpack.c.l.b16 %v483
    %v612 = vunpack.c.l.b16 %v484
    %v613 = vunpack.c.l.b16 %v485
    %v614 = vunpack.c.l.b16 %v486
    %v615 = vunpack.c.l.b16 %v487
    %v616 = vunpack.c.l.b16 %v488
    %v617 = vunpack.c.l.b16 %v489
    %v618 = vunpack.c.l.b16 %v490
    %v619 = vpack.c.b16 %v556, %v555
    %v620 = vpack.c.b16 %v558, %v557
    %v621 = vpack.c.b16 %v560, %v559
    %v622 = vpack.c.b16 %v562, %v561
    %v623 = vpack.c.b16 %v564, %v563
    %v624 = vpack.c.b16 %v566, %v565
    %v625 = vpack.c.b16 %v568, %v567
    %v626 = vpack.c.b16 %v570, %v569
    %v627 = vpack.c.b16 %v572, %v571
    %v628 = vpack.c.b16 %v574, %v573
    %v629 = vpack.c.b16 %v576, %v575
    %v630 = vpack.c.b16 %v578, %v577
    %v631 = vpack.c.b16 %v580, %v579
    %v632 = vpack.c.b16 %v582, %v581
    %v633 = vpack.c.b16 %v584, %v583
    %v634 = vpack.c.b16 %v586, %v585
    %v635 = vpack.c.b16 %v588, %v587
    %v636 = vpack.c.b16 %v590, %v589
    %v637 = vpack.c.b16 %v592, %v591
    %v638 = vpack.c.b16 %v594, %v593
    %v639 = vpack.c.b16 %v596, %v595
    %v640 = vpack.c.b16 %v598, %v597
    %v641 = vpack.c.b16 %v600, %v599
    %v642 = vpack.c.b16 %v602, %v601
    %v643 = vpack.c.b16 %v604, %v603
    %v644 = vpack.c.b16 %v606, %v605
    %v645 = vpack.c.b16 %v608, %v607
    %v646 = vpack.c.b16 %v610, %v609
    %v647 = vpack.c.b16 %v612, %v611
    %v648 = vpack.c.b16 %v614, %v613
    %v649 = vpack.c.b16 %v616, %v615
    %v650 = vpack.c.b16 %v618, %v617
    %683 = vmatprep.subr.bf16.mxu0 0
    %684 = vmatpush1.bf16.msra.mxu0 %v619
    %685 = vmatprep.subr.bf16.mxu0 0
    %686 = vmatpush1.bf16.msra.mxu0 %v620
    %687 = vmatprep.subr.bf16.mxu0 0
    %688 = vmatpush1.bf16.msra.mxu0 %v621
    %689 = vmatprep.subr.bf16.mxu0 0
    %690 = vmatpush1.bf16.msra.mxu0 %v622
    %691 = vmatprep.subr.bf16.mxu0 0
    %692 = vmatpush1.bf16.msra.mxu0 %v623
    %693 = vmatprep.subr.bf16.mxu0 0
    %694 = vmatpush1.bf16.msra.mxu0 %v624
    %695 = vmatprep.subr.bf16.mxu0 0
    %696 = vmatpush1.bf16.msra.mxu0 %v625
    %697 = vmatprep.subr.bf16.mxu0 0
    %698 = vmatpush1.bf16.msra.mxu0 %v626
    %699 = vmatprep.subr.bf16.mxu0 0
    %700 = vmatpush1.bf16.msra.mxu0 %v627
    %701 = vmatprep.subr.bf16.mxu0 0
    %702 = vmatpush1.bf16.msra.mxu0 %v628
    %703 = vmatprep.subr.bf16.mxu0 0
    %704 = vmatpush1.bf16.msra.mxu0 %v629
    %705 = vmatprep.subr.bf16.mxu0 0
    %706 = vmatpush1.bf16.msra.mxu0 %v630
    %707 = vmatprep.subr.bf16.mxu0 0
    %708 = vmatpush1.bf16.msra.mxu0 %v631
    %709 = vmatprep.subr.bf16.mxu0 0
    %710 = vmatpush1.bf16.msra.mxu0 %v632
    %711 = vmatprep.subr.bf16.mxu0 0
    %712 = vmatpush1.bf16.msra.mxu0 %v633
    %713 = vmatprep.subr.bf16.mxu0 0
    %714 = vmatpush1.bf16.msra.mxu0 %v634
    %715 = vmatprep.mubr.bf16.mxu0 %v424
    %716 = vmatmul.mubr.bf16.gmra.mrb[0].mxu0 %v423
    %v717 = vpop.f32.mrb[0].mxu0
    %v718 = vadd.f32 0.0, %v717
    %v719 = vpop.f32.mrb[0].mxu0
    %v720 = vpop.f32.mrb[0].mxu0
    %v721 = vadd.f32 0.0, %v720
    %v722 = vpop.f32.mrb[0].mxu0
    %723 = vdwg.mxu0
    %724 = vmatprep.subr.bf16.mxu0 0
    %725 = vmatpush1.bf16.msra.mxu0 %v635
    %726 = vmatprep.subr.bf16.mxu0 0
    %727 = vmatpush1.bf16.msra.mxu0 %v636
    %728 = vmatprep.subr.bf16.mxu0 0
    %729 = vmatpush1.bf16.msra.mxu0 %v637
    %730 = vmatprep.subr.bf16.mxu0 0
    %731 = vmatpush1.bf16.msra.mxu0 %v638
    %732 = vmatprep.subr.bf16.mxu0 0
    %733 = vmatpush1.bf16.msra.mxu0 %v639
    %734 = vmatprep.subr.bf16.mxu0 0
    %735 = vmatpush1.bf16.msra.mxu0 %v640
    %736 = vmatprep.subr.bf16.mxu0 0
    %737 = vmatpush1.bf16.msra.mxu0 %v641
    %738 = vmatprep.subr.bf16.mxu0 0
    %739 = vmatpush1.bf16.msra.mxu0 %v642
    %740 = vmatprep.subr.bf16.mxu0 0
    %741 = vmatpush1.bf16.msra.mxu0 %v643
    %742 = vmatprep.subr.bf16.mxu0 0
    %743 = vmatpush1.bf16.msra.mxu0 %v644
    %744 = vmatprep.subr.bf16.mxu0 0
    %745 = vmatpush1.bf16.msra.mxu0 %v645
    %746 = vmatprep.subr.bf16.mxu0 0
    %747 = vmatpush1.bf16.msra.mxu0 %v646
    %748 = vmatprep.subr.bf16.mxu0 0
    %749 = vmatpush1.bf16.msra.mxu0 %v647
    %750 = vmatprep.subr.bf16.mxu0 0
    %751 = vmatpush1.bf16.msra.mxu0 %v648
    %752 = vmatprep.subr.bf16.mxu0 0
    %753 = vmatpush1.bf16.msra.mxu0 %v649
    %754 = vmatprep.subr.bf16.mxu0 0
    %755 = vmatpush1.bf16.msra.mxu0 %v650
    %756 = vmatprep.mubr.bf16.mxu0 %v426
    %757 = vmatmul.mubr.bf16.gmra.mrb[0].mxu0 %v425
    %v758 = vpop.f32.mrb[0].mxu0
    %v759 = vadd.f32 %v718, %v758
    %v760 = vpop.f32.mrb[0].mxu0
    %v761 = vpop.f32.mrb[0].mxu0
    %v762 = vadd.f32 %v721, %v761
    %v763 = vpop.f32.mrb[0].mxu0
    %764 = vdwg.mxu0
    %v765 = vadd.f32 %v421, %v759
    %v766 = vadd.f32 %v422, %v762
    %767 = vst [vmem:[#allocation2] sm:$0xff] %v765
    %768 = vst [vmem:[#allocation2 + $0x8] sm:$0xff] %v766
    // Predicated region
    $region30: #{tpu_custom_call.1} parent=1 // pred_check
      %p769 = pneg %p57
    $region31: #{tpu_custom_call.1} parent=1 // pred_check_branch
      %771 = sbr.rel (%p769) target = $region33
    $region32: #{tpu_custom_call.1} parent=1 // pred_region
      %v772 = vld [vmem:[#allocation2] sm:$0xff]
      %v773 = vld [vmem:[#allocation2 + $0x8] sm:$0xff]
      %774 = vst [vmem:[#allocation9] sm:$0xff] %v772
      %775 = vst [vmem:[#allocation9 + $0x8] sm:$0xff] %v773
    $region33: #{tpu_custom_call.1} parent=1 // pred_fallthru
      _
    // Predicated region
    $region34: #{tpu_custom_call.1} parent=1 // pred_check
      _
    $region35: #{tpu_custom_call.1} parent=1 // pred_check_branch
      %777 = sbr.rel (0) target = $region37
    $region36: #{tpu_custom_call.1} parent=1 // pred_region
      %s779 = ssub.s32 256, 256
      %780 = vsyncadd [#allocation5], %s779
      %s781 = sshll.u32 [#allocation9], 4
      %s782 = int_to_ptr.vmem [resolvable:$true] %s781
      %787 = dma.vmem_to_hbm [thread:$0]  %s782, 256, %s3, [#allocation5], 128, 128, 8
    $region37: #{tpu_custom_call.1} parent=1 // pred_fallthru
      _
    // Predicated region
    $region38: #{tpu_custom_call.1} parent=1 // pred_check
      _
    $region39: #{tpu_custom_call.1} parent=1 // pred_check_branch
      %789 = sbr.rel (0) target = $region41
    $region40: #{tpu_custom_call.1} parent=1 // pred_region
      %790 = dma.done [#allocation5], 256
    $region41: #{tpu_custom_call.1} parent=1 // pred_fallthru
      _
    %791 = vsyncpa [#allocation4], 1
    %792 = vsyncpa [#allocation7], 1
    %793 = vsyncpa [#allocation5], 1

</llo_original>
